<compile_context>
chip_gen: v5e
topology: v5e:2x2
jax: 0.10.0
libtpu: 0.0.40
codegen_flags: <defaults>
</compile_context>

<pallas_src>
import jax
import jax.numpy as jnp
from jax import lax
from jax.experimental import pallas as pl
from jax.experimental.pallas import tpu as pltpu

GROUP = 8  # channels reduced per sublane group (f32 accumulator sublanes)


def _round_up(a, b):
    return -(-a // b) * b


def _vmem_usable_bytes():
    """~75% of this generation's per-core VMEM (64 MiB v7x, 128 MiB v5e/v6e)."""
    cap = 64 * 1024 * 1024  # conservative default (v7x per TensorCore)
    try:
        info = pltpu.get_tpu_info()
        cap = int(getattr(info, "vmem_capacity_bytes", cap) or cap)
    except Exception:
        pass
    return (cap * 3) // 4


def _pick_channel_tile(C, HW, itemsize, block_budget):
    """Channels per grid step: a multiple of GROUP whose (Ct, HW) input block,
    after (sublane, 128-lane) tile padding, fits the per-block VMEM budget."""
    lanes = _round_up(HW, 128)
    sub = max(8, 32 // max(1, itemsize))      # sublane packing granule per dtype

    def block_bytes(ct):
        return _round_up(ct, sub) * lanes * itemsize

    c_full = _round_up(C, GROUP)
    if block_bytes(c_full) <= block_budget:
        return c_full                          # whole channel dim in one tile
    best = 0                                   # largest mult-of-8 divisor of C
    for ct in range(GROUP, C, GROUP):
        if C % ct == 0 and block_bytes(ct) <= block_budget:
            best = ct
    if best:
        return best
    # Fallback (C has no multiple-of-8 divisor under budget): balanced tiles;
    # the wrapper zero-pads the channel dim up to num_ct * Ct.
    max_ct = max(GROUP, (block_budget // (lanes * itemsize)) // GROUP * GROUP)
    n_tiles = pl.cdiv(C, max_ct)
    return _round_up(pl.cdiv(C, n_tiles), GROUP)


def _make_reduce_kernel(C, Ct, needs_mask):
    n_groups = Ct // GROUP

    def kernel(x_ref, o_ref, sum_ref, max_ref):
        ct = pl.program_id(1)

        # Re-init per batch element (ct == 0) so correctness holds even when
        # the parallel batch axis is sharded across TensorCores.
        @pl.when(ct == 0)
        def _init():
            sum_ref[...] = jnp.zeros_like(sum_ref)
            max_ref[...] = jnp.full_like(max_ref, -jnp.inf)

        if needs_mask:
            sub_iota = lax.broadcasted_iota(jnp.int32, (GROUP, 1), 0)

        def body(g, carry):
            s, m = carry
            c0 = pl.multiple_of(g * GROUP, GROUP)
            xg = x_ref[0, pl.ds(c0, GROUP), :].astype(jnp.float32)  # (8, HW)
            if needs_mask:
                # Host-side zero padding of the channel dim is harmless for
                # the sum, but padded channels must not win the max.
                live = (ct * Ct + g * GROUP + sub_iota) < C
                xm = jnp.where(live, xg, -jnp.inf)
            else:
                xm = xg
            return s + xg, jnp.maximum(m, xm)

        s, m = lax.fori_loop(0, n_groups, body, (sum_ref[...], max_ref[...]),
                             unroll=min(4, n_groups))
        sum_ref[...] = s
        max_ref[...] = m

        # Collapse the sublane groups once, on the last channel tile.
        @pl.when(ct == pl.num_programs(1) - 1)
        def _finalize():
            o_ref[0, 0:1, :] = jnp.sum(sum_ref[...], axis=0, keepdims=True)
            o_ref[0, 1:2, :] = jnp.max(max_ref[...], axis=0, keepdims=True)

    return kernel


def _make_conv_kernel(H, W, K, Hp, Wp, out_dtype):
    p = (K - 1) // 2

    def kernel(w_ref, f_ref, o_ref, pad_ref):
        # Zero-padded (2, Hp, Wp) planes; feature at rows [p, p+H), lanes [0, W).
        pad_ref[...] = jnp.zeros_like(pad_ref)
        pad_ref[0, p:p + H, 0:W] = f_ref[0, 0]       # channel sum (1/C in weights)
        pad_ref[1, p:p + H, 0:W] = f_ref[0, 1]       # channel max

        acc = None
        for ci in range(2):
            plane = pad_ref[ci]                      # (Hp, Wp)
            for kw in range(K):
                # One lane roll per (plane, kw); the left padding is absorbed
                # into the shift (feature at lane 0, lanes >= W are zero, so
                # circular wrap only ever reads zeros).
                shift = (p - kw) % Wp
                rp = plane if shift == 0 else pltpu.roll(plane, shift, axis=1)
                for kh in range(K):
                    w = w_ref[(ci * K + kh) * K + kw]     # SMEM scalar
                    term = rp[kh:kh + H, :] * w
                    acc = term if acc is None else acc + term

        o_ref[0, 0] = jax.nn.sigmoid(acc[:, :W]).astype(out_dtype)

    return kernel


def spatial_attention(x, weight):
    """x: (N, C, H, W); weight: (1, 2, K, K) -> (N, 1, H, W) in x.dtype."""
    N, C, H, W = x.shape
    assert weight.ndim == 4 and weight.shape[0] == 1 and weight.shape[1] == 2
    K = weight.shape[2]
    assert weight.shape[3] == K and K % 2 == 1
    p = (K - 1) // 2
    HW = H * W
    Hp = H + 2 * p
    Wp = _round_up(W + 2 * p, 128)

    usable = _vmem_usable_bytes()
    itemsize = x.dtype.itemsize

    # ---------------- Kernel 1: lane-dense channel reduction ----------------
    block_budget = max(512 * 1024, usable // 4)     # double-buffered input fits
    Ct = _pick_channel_tile(C, HW, itemsize, block_budget)
    num_ct = pl.cdiv(C, Ct)
    Cp = num_ct * Ct
    needs_mask = Cp > C

    x3 = x.reshape(N, C, HW)                        # free: row-major contiguous
    if needs_mask:
        # Rare path (C has no multiple-of-8 structure): zero-pad the channel
        # dim so every block / sublane group is full.
        x3 = jnp.pad(x3, ((0, 0), (0, Cp - C), (0, 0)))

    lanes = _round_up(HW, 128)
    sub = max(8, 32 // max(1, itemsize))
    in_blk1 = _round_up(Ct, sub) * lanes * itemsize
    out_blk1 = 8 * lanes * 4                        # (1, 2, HW) f32, tiled
    scratch1 = 2 * GROUP * lanes * 4
    need1 = 2 * in_blk1 + 2 * out_blk1 + scratch1
    vmem1 = int(min(max(need1 + (4 << 20), 16 << 20), usable))

    feat = pl.pallas_call(
        _make_reduce_kernel(C, Ct, needs_mask),
        out_shape=jax.ShapeDtypeStruct((N, 2, HW), jnp.float32),
        grid_spec=pltpu.PrefetchScalarGridSpec(
            num_scalar_prefetch=0,
            grid=(N, num_ct),
            in_specs=[pl.BlockSpec((1, Ct, HW), lambda n, ct: (n, ct, 0))],
            out_specs=pl.BlockSpec((1, 2, HW), lambda n, ct: (n, 0, 0)),
            scratch_shapes=[pltpu.VMEM((GROUP, HW), jnp.float32),
                            pltpu.VMEM((GROUP, HW), jnp.float32)],
        ),
        compiler_params=pltpu.CompilerParams(
            dimension_semantics=("parallel", "arbitrary"),
            vmem_limit_bytes=vmem1,
        ),
    )(x3)

    # ----------- Kernel 2: KxK (2->1) conv + sigmoid, once per image --------
    # Fold 1/C into the "avg" half of the weights (feat[:, 0] is the raw sum).
    w = weight.astype(jnp.float32)
    w = w.at[:, 0].multiply(jnp.float32(1.0 / C))
    w_flat = w.reshape(-1)                          # [ci, kh, kw] order

    feat4 = feat.reshape(N, 2, H, W)                # free: contiguous

    in_blk2 = 2 * _round_up(H, 8) * _round_up(W, 128) * 4
    out_blk2 = _round_up(H, 8) * _round_up(W, 128) * itemsize
    scratch2 = 2 * _round_up(Hp, 8) * Wp * 4
    need2 = 2 * in_blk2 + 2 * out_blk2 + scratch2
    vmem2 = int(min(max(need2 + (4 << 20), 16 << 20), usable))

    return pl.pallas_call(
        _make_conv_kernel(H, W, K, Hp, Wp, x.dtype),
        out_shape=jax.ShapeDtypeStruct((N, 1, H, W), x.dtype),
        grid_spec=pltpu.PrefetchScalarGridSpec(
            num_scalar_prefetch=0,
            grid=(N,),
            in_specs=[
                pl.BlockSpec(memory_space=pltpu.MemorySpace.SMEM),   # weights
                pl.BlockSpec((1, 2, H, W), lambda n: (n, 0, 0, 0)),
            ],
            out_specs=pl.BlockSpec((1, 1, H, W), lambda n: (n, 0, 0, 0)),
            scratch_shapes=[pltpu.VMEM((2, Hp, Wp), jnp.float32)],
        ),
        compiler_params=pltpu.CompilerParams(
            dimension_semantics=("parallel",),
            vmem_limit_bytes=vmem2,
        ),
    )(w_flat, feat4)


def spatial_attention_ref(x, weight):
    """Pure-JAX reference mirroring the PyTorch forward."""
    pad = (weight.shape[2] - 1) // 2
    avg_out = jnp.mean(x, axis=1, keepdims=True)
    max_out = jnp.max(x, axis=1, keepdims=True)
    feat = jnp.concatenate([avg_out, max_out], axis=1)        # (N, 2, H, W)
    y = lax.conv_general_dilated(
        feat, weight,
        window_strides=(1, 1),
        padding=[(pad, pad), (pad, pad)],
        dimension_numbers=("NCHW", "OIHW", "NCHW"),
    )
    return jax.nn.sigmoid(y)


if __name__ == "__main__":
    key = jax.random.PRNGKey(0)
    kx, kw = jax.random.split(key)

    N, C, H, W = 2, 4, 16, 16
    KS = 7
    x = jax.random.normal(kx, (N, C, H, W), dtype=jnp.float32)

    # Deterministic conv weight (Conv2d(2, 1, 7, bias=False) -> (1, 2, 7, 7)).
    fan_in = 2 * KS * KS
    bound = (1.0 / fan_in) ** 0.5
    weight = jax.random.uniform(
        kw, (1, 2, KS, KS), minval=-bound, maxval=bound, dtype=jnp.float32)

    out = spatial_attention(x, weight)
    out = jax.block_until_ready(out)

    ref = spatial_attention_ref(x, weight)
    assert out.shape == (N, 1, H, W), out.shape
    assert jnp.allclose(out, ref, atol=1e-5, rtol=1e-5), \
        float(jnp.max(jnp.abs(out - ref)))

    print("KERNEL_OK")
</pallas_src>

<mosaic_0001>
module attributes {stable_mosaic.version = 11 : i64} {
  func.func @kernel(%arg0: i32, %arg1: i32, %arg2: memref<1x8x256xf32, #tpu.memory_space<vmem>>, %arg3: memref<1x2x256xf32, #tpu.memory_space<vmem>>, %arg4: memref<8x256xf32, #tpu.memory_space<vmem>>, %arg5: memref<8x256xf32, #tpu.memory_space<vmem>>) attributes {dimension_semantics = [#tpu.dimension_semantics<parallel>, #tpu.dimension_semantics<arbitrary>], iteration_bounds = array<i64: 2, 1>, scalar_prefetch = 0 : i64, scratch_operands = 2 : i64, tpu.core_type = #tpu.core_type<tc>, window_params = [{transform_indices = @transform_0, window_bounds = array<i64: 1, 8, 256>}, {transform_indices = @transform_1, window_bounds = array<i64: 1, 2, 256>}]} {
    %c0_i32 = arith.constant 0 : i32
    %0 = arith.cmpi eq, %arg1, %c0_i32 : i32
    %1 = arith.extui %0 : i1 to i32
    %c0_i32_0 = arith.constant 0 : i32
    %2 = arith.cmpi ne, %1, %c0_i32_0 : i32
    scf.if %2 {
      %cst_15 = arith.constant 0.000000e+00 : f32
      %29 = vector.broadcast %cst_15 : f32 to vector<8x256xf32>
      %c0_16 = arith.constant 0 : index
      %c0_17 = arith.constant 0 : index
      %30 = vector.load %arg4[%c0_16, %c0_17] : memref<8x256xf32, #tpu.memory_space<vmem>>, vector<8x256xf32>
      tpu.vector_store %arg4[%c0_16, %c0_17], %29 {strides = array<i32>} : memref<8x256xf32, #tpu.memory_space<vmem>>, vector<8x256xf32>,
      %cst_18 = arith.constant 0xFF800000 : f32
      %31 = vector.broadcast %cst_18 : f32 to vector<8x256xf32>
      %c0_19 = arith.constant 0 : index
      %c0_20 = arith.constant 0 : index
      %32 = vector.load %arg5[%c0_19, %c0_20] : memref<8x256xf32, #tpu.memory_space<vmem>>, vector<8x256xf32>
      tpu.vector_store %arg5[%c0_19, %c0_20], %31 {strides = array<i32>} : memref<8x256xf32, #tpu.memory_space<vmem>>, vector<8x256xf32>,
    } else {
    }
    %3 = tpu.iota {dimensions = array<i32: 0>} : vector<8x1xi32>
    %c0 = arith.constant 0 : index
    %c0_1 = arith.constant 0 : index
    %4 = vector.load %arg4[%c0, %c0_1] : memref<8x256xf32, #tpu.memory_space<vmem>>, vector<8x256xf32>
    %c0_2 = arith.constant 0 : index
    %c0_3 = arith.constant 0 : index
    %5 = vector.load %arg5[%c0_2, %c0_3] : memref<8x256xf32, #tpu.memory_space<vmem>>, vector<8x256xf32>
    %c0_i32_4 = arith.constant 0 : i32
    %c8_i32 = arith.constant 8 : i32
    %6 = arith.muli %c0_i32_4, %c8_i32 : i32
    %7 = tpu.assume_multiple %6, 8 : i32
    %c0_5 = arith.constant 0 : index
    %8 = arith.index_cast %7 : i32 to index
    %c0_6 = arith.constant 0 : index
    %9 = vector.load %arg2[%c0_5, %8, %c0_6] : memref<1x8x256xf32, #tpu.memory_space<vmem>>, vector<1x8x256xf32>
    %10 = vector.shape_cast %9 : vector<1x8x256xf32> to vector<8x256xf32>
    %c8_i32_7 = arith.constant 8 : i32
    %11 = arith.muli %arg1, %c8_i32_7 : i32
    %c8_i32_8 = arith.constant 8 : i32
    %12 = arith.muli %c0_i32_4, %c8_i32_8 : i32
    %13 = arith.addi %11, %12 : i32
    %14 = vector.broadcast %13 : i32 to vector<8x1xi32>
    %15 = arith.addi %14, %3 : vector<8x1xi32>
    %c4_i32 = arith.constant 4 : i32
    %16 = vector.broadcast %c4_i32 : i32 to vector<8x1xi32>
    %17 = arith.cmpi slt, %15, %16 : vector<8x1xi32>
    %cst = arith.constant 0xFF800000 : f32
    %18 = vector.shape_cast %17 : vector<8x1xi1> to vector<8x1xi1>
    %19 = vector.broadcast %18 : vector<8x1xi1> to vector<8x256xi1>
    %20 = vector.broadcast %cst : f32 to vector<8x256xf32>
    %21 = arith.select %19, %10, %20 : vector<8x256xi1>, vector<8x256xf32>
    %22 = arith.addf %4, %10 : vector<8x256xf32>
    %23 = arith.maximumf %5, %21 : vector<8x256xf32>
    %c1_i32 = arith.constant 1 : i32
    %c0_9 = arith.constant 0 : index
    %c0_10 = arith.constant 0 : index
    %24 = vector.load %arg4[%c0_9, %c0_10] : memref<8x256xf32, #tpu.memory_space<vmem>>, vector<8x256xf32>
    tpu.vector_store %arg4[%c0_9, %c0_10], %22 {strides = array<i32>} : memref<8x256xf32, #tpu.memory_space<vmem>>, vector<8x256xf32>,
    %c0_11 = arith.constant 0 : index
    %c0_12 = arith.constant 0 : index
    %25 = vector.load %arg5[%c0_11, %c0_12] : memref<8x256xf32, #tpu.memory_space<vmem>>, vector<8x256xf32>
    tpu.vector_store %arg5[%c0_11, %c0_12], %23 {strides = array<i32>} : memref<8x256xf32, #tpu.memory_space<vmem>>, vector<8x256xf32>,
    %c0_i32_13 = arith.constant 0 : i32
    %26 = arith.cmpi eq, %arg1, %c0_i32_13 : i32
    %27 = arith.extui %26 : i1 to i32
    %c0_i32_14 = arith.constant 0 : i32
    %28 = arith.cmpi ne, %27, %c0_i32_14 : i32
    scf.if %28 {
      %c0_15 = arith.constant 0 : index
      %c0_16 = arith.constant 0 : index
      %29 = vector.load %arg4[%c0_15, %c0_16] : memref<8x256xf32, #tpu.memory_space<vmem>>, vector<8x256xf32>
      %cst_17 = arith.constant dense<0.000000e+00> : vector<256xf32>
      %30 = vector.multi_reduction <add>, %29, %cst_17 [0] : vector<8x256xf32> to vector<256xf32>
      %31 = vector.shape_cast %30 : vector<256xf32> to vector<1x256xf32>
      %c0_18 = arith.constant 0 : index
      %c0_19 = arith.constant 0 : index
      %c0_20 = arith.constant 0 : index
      %32 = vector.load %arg3[%c0_18, %c0_19, %c0_20] : memref<1x2x256xf32, #tpu.memory_space<vmem>>, vector<1x1x256xf32>
      %33 = vector.shape_cast %32 : vector<1x1x256xf32> to vector<1x256xf32>
      %34 = vector.shape_cast %31 : vector<1x256xf32> to vector<1x1x256xf32>
      tpu.vector_store %arg3[%c0_18, %c0_19, %c0_20], %34 {strides = array<i32>} : memref<1x2x256xf32, #tpu.memory_space<vmem>>, vector<1x1x256xf32>,
      %c0_21 = arith.constant 0 : index
      %c0_22 = arith.constant 0 : index
      %35 = vector.load %arg5[%c0_21, %c0_22] : memref<8x256xf32, #tpu.memory_space<vmem>>, vector<8x256xf32>
      %cst_23 = arith.constant dense<0xFF800000> : vector<256xf32>
      %36 = vector.multi_reduction <maximumf>, %35, %cst_23 [0] : vector<8x256xf32> to vector<256xf32>
      %37 = vector.shape_cast %36 : vector<256xf32> to vector<1x256xf32>
      %c0_24 = arith.constant 0 : index
      %c1 = arith.constant 1 : index
      %c0_25 = arith.constant 0 : index
      %38 = vector.load %arg3[%c0_24, %c1, %c0_25] : memref<1x2x256xf32, #tpu.memory_space<vmem>>, vector<1x1x256xf32>
      %39 = vector.shape_cast %38 : vector<1x1x256xf32> to vector<1x256xf32>
      %40 = vector.shape_cast %37 : vector<1x256xf32> to vector<1x1x256xf32>
      tpu.vector_store %arg3[%c0_24, %c1, %c0_25], %40 {strides = array<i32>} : memref<1x2x256xf32, #tpu.memory_space<vmem>>, vector<1x1x256xf32>,
    } else {
    }
    return
  }
  func.func @transform_0(%arg0: i32, %arg1: i32) -> (i32, i32, i32) {
    %c0_i32 = arith.constant 0 : i32
    %c0_i32_0 = arith.constant 0 : i32
    return %arg0, %arg1, %c0_i32 : i32, i32, i32
  }
  func.func @transform_1(%arg0: i32, %arg1: i32) -> (i32, i32, i32) {
    %c0_i32 = arith.constant 0 : i32
    %c0_i32_0 = arith.constant 0 : i32
    %c0_i32_1 = arith.constant 0 : i32
    return %arg0, %c0_i32, %c0_i32_0 : i32, i32, i32
  }
}

</mosaic_0001>

<llo_original>
// kernel: tpu_custom_call.1
$region0: #{tpu_custom_call.1}
  #allocation0 [shape = 'u32[]', space=smem, size = 0x4, offset = 0x4, fixed_abs, tag = 'smem constant byte address 0x4 - core index']
  #allocation1 [shape = 'u32[72,128]{1,0:T(1,128)}', space=vmem, size = 0x9000, scoped, tag = 'internal scratch']
  #allocation2 [shape = 'f32[8,256]{1,0:T(8,128)}', space=vmem, size = 0x2000, scoped, tag = 'scratch operand']
  #allocation3 [shape = 'f32[8,256]{1,0:T(8,128)}', space=vmem, size = 0x2000, scoped, tag = 'scratch operand']
  %s0 = inlined_call_operand.hbm [shape: f32[2,8,256], index: 0, kind: input, shape index: {}]
  %s1 = inlined_call_operand.hbm [shape: f32[2,2,256], index: 1, kind: output, shape index: {}]
  %s2 = sld [smem:[#allocation0]]
  $region49: #{tpu_custom_call.1} parent=0
    _
  %s4 = ssub.s32 1, %s2
  %s5 = scalar_select 0, %s4, %s2
  $region1: #{tpu_custom_call.1} parent=0
    #allocation4 [shape = 'u8[16384]{0}', space=vmem, size = 0x4000, scoped, tag = 'input window, operand 0']
    #allocation5 [shape = 's32[2]{0}', space=sflag, size = 0x8, scoped, tag = 'scoped memory for tpu_custom_call.1']
    #allocation6 [shape = 's32[2]{0}', space=sflag, size = 0x8, scoped, tag = 'scoped memory for tpu_custom_call.1']
    #allocation7 [shape = 'u8[4096]{0}', space=vmem, size = 0x1000, scoped, tag = 'output window, operand 0']
    %6 = vsyncpa [#allocation5], 0
    %s7 = scalar_lea.sflag [#allocation5], 1
    %8 = vsyncpa %s7, 0
    %9 = vsyncpa [#allocation6], 0
    %s10 = scalar_lea.sflag [#allocation6], 1
    %11 = vsyncpa %s10, 0
    loop: start=0, step=1, limit=4
    $region2: #{tpu_custom_call.1} parent=1 // loop_pre_header
      _
    $region3: #{tpu_custom_call.1} parent=1 // loop_header
      %s13 = sphi 0, %s17
      %p14 = scmp.ge.s32.totalorder %s13, 4
      %s20 = sphi 0, %s32
      %s21 = sphi 0, %s28
      %s22 = sphi 0, %s20
      %s23 = sphi 0, %s21
      %s24 = sphi 0, %s22
      %s25 = sphi 0, %s23
      %s37 = sphi 0, %s39
      %s40 = sphi 0, %s37
      %s41 = sphi 0, %s40
      %s57 = sphi 0, %s41
      %s63 = sphi 0, %s65
      %s66 = sphi 0, %s63
      %s67 = sphi 0, %s66
      %s83 = sphi 0, %s67
    $region4: #{tpu_custom_call.1} parent=1 // loop_header_branch
      %16 = sbr.rel (%p14) target = $region8
    $region5: #{tpu_custom_call.1} parent=1 // loop_body
      %s18 = ssub.s32 %s13, 1
      %s19 = ssub.s32 %s13, 2
      %s26 = sadd.s32 1, %s21
      %p27 = scmp.ge.s32.totalorder %s26, 1
      %s28 = scalar_select %p27, 0, %s26
      %s29 = sadd.s32 1, %s20
      %s30 = scalar_select %p27, %s29, %s20
      %p31 = scmp.ge.s32.totalorder %s30, 2
      %s32 = scalar_select %p31, 0, %s30
      %s33 = ssub.s32 %s20, %s32
      %s34 = ssub.s32 %s21, %s28
      %s35 = sor.u32 %s33, %s34
      %p36 = scmp.eq.s32.totalorder %s35, 0
      %s38 = sadd.s32 %s37, 1
      %s39 = scalar_select %p36, %s37, %s38
      %p42 = pneg %p36
      %p43 = scmp.eq.s32.totalorder %s13, 1
      %p44 = por %p42, %p43
      %p45 = scmp.ne.s32.totalorder %s37, %s40
      %p46 = scmp.eq.s32.totalorder %s13, 0
      %p47 = por %p45, %p46
      %p48 = scmp.ne.s32.totalorder %s37, %s40
      %p49 = scmp.eq.s32.totalorder %s18, 1
      %p50 = por %p48, %p49
      %p51 = scmp.ne.s32.totalorder %s40, %s41
      %p52 = scmp.eq.s32.totalorder %s18, 0
      %p53 = por %p51, %p52
      %p54 = scmp.ne.s32.totalorder %s40, %s41
      %p55 = scmp.eq.s32.totalorder %s19, 1
      %p56 = por %p54, %p55
      %p58 = scmp.ne.s32.totalorder %s41, %s57
      %p59 = scmp.eq.s32.totalorder %s19, 0
      %p60 = por %p58, %p59
      %s61 = ssub.s32 %s20, %s32
      %p62 = scmp.eq.s32.totalorder %s61, 0
      %s64 = sadd.s32 %s63, 1
      %s65 = scalar_select %p62, %s63, %s64
      %p68 = pneg %p62
      %p69 = scmp.eq.s32.totalorder %s13, 1
      %p70 = por %p68, %p69
      %p71 = scmp.ne.s32.totalorder %s63, %s66
      %p72 = scmp.eq.s32.totalorder %s13, 0
      %p73 = por %p71, %p72
      %p74 = scmp.ne.s32.totalorder %s63, %s66
      %p75 = scmp.eq.s32.totalorder %s18, 1
      %p76 = por %p74, %p75
      %p77 = scmp.ne.s32.totalorder %s66, %s67
      %p78 = scmp.eq.s32.totalorder %s18, 0
      %p79 = por %p77, %p78
      %p80 = scmp.ne.s32.totalorder %s66, %s67
      %p81 = scmp.eq.s32.totalorder %s19, 1
      %p82 = por %p80, %p81
      %p84 = scmp.ne.s32.totalorder %s67, %s83
      %p85 = scmp.eq.s32.totalorder %s19, 0
      %p86 = por %p84, %p85
      %p87 = scmp.le.s32.totalorder 1, %s13
      %p88 = scmp.lt.s32.totalorder %s13, 3
      %p89 = pnand %p87, %p88
      %p90 = pneg %p89
      // Predicated region
      $region9: #{tpu_custom_call.1} parent=5 // pred_check
        _
      $region10: #{tpu_custom_call.1} parent=5 // pred_check_branch
        %92 = sbr.rel (%p89) target = $region12
      $region11: #{tpu_custom_call.1} parent=5 // pred_region
        %s93 = ssub.s32 %s13, 1
      $region12: #{tpu_custom_call.1} parent=5 // pred_fallthru
        _
      %p94 = scmp.lt.s32.totalorder %s13, 2
      // Predicated region
      $region13: #{tpu_custom_call.1} parent=5 // pred_check
        %p95 = pneg %p94
      $region14: #{tpu_custom_call.1} parent=5 // pred_check_branch
        %97 = sbr.rel (%p95) target = $region16
      $region15: #{tpu_custom_call.1} parent=5 // pred_region
        // Predicated region
        $region17: #{tpu_custom_call.1} parent=15 // pred_check
          %p98 = pneg %p47
        $region18: #{tpu_custom_call.1} parent=15 // pred_check_branch
          %100 = sbr.rel (%p98) target = $region20
        $region19: #{tpu_custom_call.1} parent=15 // pred_region
          %s101 = sand.u32 %s37, 1
          %s102 = scalar_lea.sflag [#allocation5], %s101
          %s103 = sand.u32 %s37, 1
          %s104 = smul.addr %s103, 16
          %s105 = scalar_lea.vmem [#allocation4], %s104
          %107 = vsyncadd %s102, 0
          %s108 = smul.addr %s21, 2
          %s109 = smul.addr %s20, 2
          %s110 = sadd.s32 %s108, %s109
          %s111 = smul.addr %s110, 8
          %s112 = scalar_lea.hbm %s0, %s111
          %s114 = sshll.u32 %s112, 4
          %s115 = int_to_ptr.hbm [resolvable:$true] %s114
          %s116 = sshll.u32 %s105, 4
          %s117 = int_to_ptr.vmem [resolvable:$true] %s116
          %119 = dma.hbm_to_vmem [thread:$0]  %s115, 256, %s117, %s102
        $region20: #{tpu_custom_call.1} parent=15 // pred_fallthru
          _
      $region16: #{tpu_custom_call.1} parent=5 // pred_fallthru
        _
      %p120 = scmp.le.s32.totalorder 1, %s13
      %p121 = scmp.lt.s32.totalorder %s13, 3
      %p122 = pnand %p120, %p121
      %p123 = pneg %p122
      // Predicated region
      $region21: #{tpu_custom_call.1} parent=5 // pred_check
        _
      $region22: #{tpu_custom_call.1} parent=5 // pred_check_branch
        %125 = sbr.rel (%p122) target = $region24
      $region23: #{tpu_custom_call.1} parent=5 // pred_region
        %s126 = ssub.s32 %s13, 1
        %s127 = sand.u32 %s40, 1
        %s128 = scalar_lea.sflag [#allocation5], %s127
        %s129 = sand.u32 %s40, 1
        %s130 = smul.addr %s129, 16
        %s131 = scalar_lea.vmem [#allocation4], %s130
        // Predicated region
        $region25: #{tpu_custom_call.1} parent=23 // pred_check
          %p132 = pneg %p53
        $region26: #{tpu_custom_call.1} parent=23 // pred_check_branch
          %134 = sbr.rel (%p132) target = $region28
        $region27: #{tpu_custom_call.1} parent=23 // pred_region
          %136 = dma.done %s128, 256
        $region28: #{tpu_custom_call.1} parent=23 // pred_fallthru
          _
        %s137 = sand.u32 %s40, 1
        %s138 = scalar_lea.sflag [#allocation5], %s137
        %s139 = sand.u32 %s40, 1
        %s140 = smul.addr %s139, 16
        %s141 = scalar_lea.vmem [#allocation4], %s140
        %p142 = pneg %p53
        %p143 = pneg %p50
        %p144 = pneg %p79
        %p145 = pneg %p76
        %s146 = sand.u32 %s66, 1
        %s147 = scalar_lea.sflag [#allocation6], %s146
        %s148 = sand.u32 %s66, 1
        %s149 = smul.addr %s148, 4
        %s150 = scalar_lea.vmem [#allocation7], %s149
        %p151 = scmp.eq.s32.totalorder %s23, 0
        // Predicated region
        $region29: #{tpu_custom_call.1} parent=23 // pred_check
          %p152 = pneg %p151
        $region30: #{tpu_custom_call.1} parent=23 // pred_check_branch
          %154 = sbr.rel (%p152) target = $region32
        $region31: #{tpu_custom_call.1} parent=23 // pred_region
          %155 = vst [vmem:[#allocation2] sm:$0xff] 0.0
          %156 = vst [vmem:[#allocation2 + $0x8] sm:$0xff] 0.0
          %157 = vst [vmem:[#allocation3] sm:$0xff] -inf
          %158 = vst [vmem:[#allocation3 + $0x8] sm:$0xff] -inf
        $region32: #{tpu_custom_call.1} parent=23 // pred_fallthru
          _
        %v159 = vlaneseq
        %v160 = vshrl.u32 %v159, 7
        %v161 = vld [vmem:[#allocation2] sm:$0xff]
        %v162 = vld [vmem:[#allocation2 + $0x8] sm:$0xff]
        %v163 = vld [vmem:[#allocation3] sm:$0xff]
        %v164 = vld [vmem:[#allocation3 + $0x8] sm:$0xff]
        %s165 = smul.u32 0, 2
        %s166 = smul.addr %s165, 8
        %s167 = scalar_lea.vmem %s131, %s166 [#allocation4]
        %v168 = vld [vmem:[%s167] sm:$0xff]
        %v169 = vld [vmem:[%s167 + $0x8] sm:$0xff]
        %s170 = smul.u32 %s23, 8
        %v171 = vstv %s170
        %v172 = vadd.s32 %v171, %v160
        %vm173 = vcmp.lt.s32.totalorder %v172, 4
        %v174 = vsel %vm173, 1, 0
        %vm175 = vcmp.eq.s32.totalorder %v174, 1
        %v176 = vsel %vm175, %v168, -inf
        %v177 = vsel %vm175, %v169, -inf
        %v178 = vadd.f32 %v161, %v168
        %v179 = vadd.f32 %v162, %v169
        %v180 = vmax.f32 %v163, %v176
        %v181 = vmax.f32 %v164, %v177
        %182 = vst [vmem:[#allocation2] sm:$0xff] %v178
        %183 = vst [vmem:[#allocation2 + $0x8] sm:$0xff] %v179
        %184 = vst [vmem:[#allocation3] sm:$0xff] %v180
        %185 = vst [vmem:[#allocation3 + $0x8] sm:$0xff] %v181
        // Predicated region
        $region33: #{tpu_custom_call.1} parent=23 // pred_check
          %p186 = pneg %p151
        $region34: #{tpu_custom_call.1} parent=23 // pred_check_branch
          %188 = sbr.rel (%p186) target = $region36
        $region35: #{tpu_custom_call.1} parent=23 // pred_region
          %v189 = vld [vmem:[#allocation2] sm:$0xff]
          %v190 = vld [vmem:[#allocation2 + $0x8] sm:$0xff]
          %v191 = vrot.slane %v189, 4
          %v192 = vadd.f32 %v189, %v191
          %v193 = vrot.slane %v192, 2
          %v194 = vadd.f32 %v192, %v193
          %v195 = vrot.slane %v194, 1
          %v196 = vadd.f32 %v194, %v195
          %v197 = vrot.slane %v190, 4
          %v198 = vadd.f32 %v190, %v197
          %v199 = vrot.slane %v198, 2
          %v200 = vadd.f32 %v198, %v199
          %v201 = vrot.slane %v200, 1
          %v202 = vadd.f32 %v200, %v201
          %v205 = vrot.slane %v202, 7
          %vm206 = vcmask 1040384
          %v207 = vsel %vm206, %v196, %v205
          %v209 = vlaneseq
          %vm210 = vcmp.ge.s32.totalorder %v209, 0
          %vm211 = vcmp.lt.s32.totalorder %v209, 256
          %vm212 = vmand %vm210, %vm211
          %213 = vst.msk [vmem:[%s150] ss:$2 sm:$0x3] %vm212, %v207
          %v214 = vld [vmem:[#allocation3] sm:$0xff]
          %v215 = vld [vmem:[#allocation3 + $0x8] sm:$0xff]
          %v216 = vrot.slane %v214, 4
          %v217 = vmax.f32 %v214, %v216
          %v218 = vrot.slane %v217, 2
          %v219 = vmax.f32 %v217, %v218
          %v220 = vrot.slane %v219, 1
          %v221 = vmax.f32 %v219, %v220
          %v222 = vrot.slane %v215, 4
          %v223 = vmax.f32 %v215, %v222
          %v224 = vrot.slane %v223, 2
          %v225 = vmax.f32 %v223, %v224
          %v226 = vrot.slane %v225, 1
          %v227 = vmax.f32 %v225, %v226
          %v230 = vrot.slane %v227, 7
          %v231 = vsel %vm206, %v221, %v230
          %s233 = scalar_lea.vmem %s150, 1 [#allocation7]
          %234 = vst.msk [vmem:[%s233] ss:$2 sm:$0x3] %vm212, %v231
        $region36: #{tpu_custom_call.1} parent=23 // pred_fallthru
          _
        %s235 = sand.u32 %s66, 1
        %s236 = scalar_lea.sflag [#allocation6], %s235
        %s237 = sand.u32 %s66, 1
        %s238 = smul.addr %s237, 4
        %s239 = scalar_lea.vmem [#allocation7], %s238
        // Predicated region
        $region37: #{tpu_custom_call.1} parent=23 // pred_check
          %p240 = pneg %p76
        $region38: #{tpu_custom_call.1} parent=23 // pred_check_branch
          %242 = sbr.rel (%p240) target = $region40
        $region39: #{tpu_custom_call.1} parent=23 // pred_region
          %244 = vsyncadd %s236, 0
          %s245 = smul.addr %s22, 2
          %s246 = smul.addr %s245, 2
          %s247 = scalar_lea.hbm %s1, %s246
          %s249 = sshll.u32 %s239, 4
          %s250 = int_to_ptr.vmem [resolvable:$true] %s249
          %s251 = sshll.u32 %s247, 4
          %s252 = int_to_ptr.hbm [resolvable:$true] %s251
          %254 = dma.vmem_to_hbm [thread:$0]  %s250, 64, %s252, %s236
        $region40: #{tpu_custom_call.1} parent=23 // pred_fallthru
          _
      $region24: #{tpu_custom_call.1} parent=5 // pred_fallthru
        _
      %p255 = scmp.le.s32.totalorder 2, %s13
      // Predicated region
      $region41: #{tpu_custom_call.1} parent=5 // pred_check
        %p256 = pneg %p255
      $region42: #{tpu_custom_call.1} parent=5 // pred_check_branch
        %258 = sbr.rel (%p256) target = $region44
      $region43: #{tpu_custom_call.1} parent=5 // pred_region
        %s259 = ssub.s32 %s13, 2
        // Predicated region
        $region45: #{tpu_custom_call.1} parent=43 // pred_check
          %p260 = pneg %p82
        $region46: #{tpu_custom_call.1} parent=43 // pred_check_branch
          %262 = sbr.rel (%p260) target = $region48
        $region47: #{tpu_custom_call.1} parent=43 // pred_region
          %s263 = sand.u32 %s67, 1
          %s264 = scalar_lea.sflag [#allocation6], %s263
          %s265 = sand.u32 %s67, 1
          %s266 = smul.addr %s265, 4
          %s267 = scalar_lea.vmem [#allocation7], %s266
          %269 = dma.done %s264, 64
        $region48: #{tpu_custom_call.1} parent=43 // pred_fallthru
          _
      $region44: #{tpu_custom_call.1} parent=5 // pred_fallthru
        _
    $region6: #{tpu_custom_call.1} parent=1 // loop_footer
      %s17 = sadd.s32 1, %s13
    $region7: #{tpu_custom_call.1} parent=1 // loop_footer_branch
      %12 = sbr.rel target = $region3
    $region8: #{tpu_custom_call.1} parent=1 // loop_exit
      _
    %270 = vsyncpa [#allocation5], 1
    %s271 = scalar_lea.sflag [#allocation5], 1
    %272 = vsyncpa %s271, 1
    %273 = vsyncpa [#allocation6], 1
    %s274 = scalar_lea.sflag [#allocation6], 1
    %275 = vsyncpa %s274, 1

</llo_original>
